<compile_context>
chip_gen: v7x
topology: tpu7x:2x2x1
jax: 0.10.0
libtpu: 0.0.40
codegen_flags: <defaults>
</compile_context>

<pallas_src>
import functools

import jax
import jax.numpy as jnp
from jax.experimental import pallas as pl
from jax.experimental.pallas import tpu as pltpu


def _bert_embedding_kernel(tok_ref, emb_hbm, pos_ref, out_ref, gather_buf, sem,
                           *, block_rows, seq_len):
    """One grid step = one (1, block_rows, H) output tile.

    tok_ref    : (B*S,) int32 in SMEM (scalar prefetch).
    emb_hbm    : (V, H) ref left in HBM (memory_space=pl.ANY); rows gathered by DMA.
    pos_ref    : (1, block_rows, H) VMEM tile of the positional table.
    out_ref    : (1, block_rows, H) VMEM output tile.
    gather_buf : (block_rows, H) VMEM scratch holding the gathered embedding rows.
    sem        : single DMA semaphore shared by all row copies of this step.
    """
    b = pl.program_id(0)
    j = pl.program_id(1)
    s0 = j * block_rows

    # Issue all row-gather DMAs (HBM -> VMEM) for this tile.
    @pl.loop(0, block_rows)
    def _(r):
        s = jnp.minimum(s0 + r, seq_len - 1)            # clamp (only hit on ragged tails)
        tok = tok_ref[b * seq_len + s]
        pltpu.make_async_copy(emb_hbm.at[pl.ds(tok, 1), :],
                              gather_buf.at[pl.ds(r, 1), :], sem).start()

    # All copies have identical byte counts and share one semaphore, so waiting
    # `block_rows` times only returns once every gathered row has landed.
    @pl.loop(0, block_rows)
    def _(r):
        pltpu.make_async_copy(emb_hbm.at[pl.ds(0, 1), :],
                              gather_buf.at[pl.ds(r, 1), :], sem).wait()

    out_ref[...] = (gather_buf[...] + pos_ref[...]).astype(out_ref.dtype)


def _pick_block_rows(seq_len, hidden, budget_bytes=4 << 20):
    """Largest multiple-of-8 divisor of seq_len (<=256) whose (rows, H) f32 tile fits budget."""
    cands = [r for r in range(8, min(seq_len, 256) + 1, 8)
             if seq_len % r == 0 and r * hidden * 4 <= budget_bytes]
    return max(cands) if cands else seq_len   # full-sequence block is always layout-legal


def bert_embedding(tokens, emb_table, pos_embedding, valid_lens=None):
    """Pallas equivalent of BertEmbedding.forward(tokens, valid_lens)."""
    del valid_lens  # Broadcasting in the PyTorch add forces valid_lens.max() == seq_len,
    # so the dynamic slice resolves statically (jit-able wrapper, no host sync).
    B, S = tokens.shape
    V, H = emb_table.shape
    R = _pick_block_rows(S, H)
    dtype = emb_table.dtype

    tokens_flat = tokens.reshape(B * S).astype(jnp.int32)
    pos3 = pos_embedding[:, :S, :].astype(dtype)        # (1, S, H), static slice

    kernel = functools.partial(_bert_embedding_kernel, block_rows=R, seq_len=S)

    grid_spec = pltpu.PrefetchScalarGridSpec(
        num_scalar_prefetch=1,                           # tokens_flat lands in SMEM
        grid=(B, pl.cdiv(S, R)),
        in_specs=[
            pl.BlockSpec(memory_space=pl.ANY),                       # embedding table (HBM)
            pl.BlockSpec((1, R, H), lambda b, j, tok: (0, j, 0)),    # positional rows
        ],
        out_specs=pl.BlockSpec((1, R, H), lambda b, j, tok: (b, j, 0)),
        scratch_shapes=[
            pltpu.VMEM((R, H), dtype),                   # gathered embedding rows
            pltpu.SemaphoreType.DMA(()),                 # shared gather semaphore
        ],
    )

    return pl.pallas_call(
        kernel,
        out_shape=jax.ShapeDtypeStruct((B, S, H), dtype),
        grid_spec=grid_spec,
        compiler_params=pltpu.CompilerParams(
            dimension_semantics=("parallel", "parallel"),  # independent tiles -> megacore
        ),
    )(tokens_flat, emb_table, pos3)


if __name__ == "__main__":
    # Small deterministic setup consistent with the module's __init__ / forward.
    vocab_size = 512
    num_hiddens = 128        # multiple of 128 -> lane-dense output stores
    max_len = 64
    batch = 2
    seq = 8

    key = jax.random.PRNGKey(0)
    k_emb, k_pos, k_tok = jax.random.split(key, 3)

    # nn.Embedding weight ~ N(0,1); pos_embedding = torch.randn(1, max_len, H)
    emb_table = jax.random.normal(k_emb, (vocab_size, num_hiddens), dtype=jnp.float32)
    pos_embedding = jax.random.normal(k_pos, (1, max_len, num_hiddens), dtype=jnp.float32)
    tokens = jax.random.randint(k_tok, (batch, seq), 0, vocab_size, dtype=jnp.int32)
    valid_lens = jnp.array([5, seq], dtype=jnp.int32)    # max == seq, as the forward requires

    fn = jax.jit(bert_embedding)
    out = jax.block_until_ready(fn(tokens, emb_table, pos_embedding, valid_lens))

    # Pure-JAX reference of the same semantics.
    ref = jnp.take(emb_table, tokens, axis=0) + pos_embedding[:, :seq, :]
    assert out.shape == (batch, seq, num_hiddens)
    assert jnp.allclose(out, ref, atol=1e-5, rtol=1e-5)

    print("KERNEL_OK")
</pallas_src>

<mosaic_0001>
module attributes {stable_mosaic.version = 11 : i64} {
  func.func @_bert_embedding_kernel(%arg0: i32, %arg1: i32, %arg2: memref<16xi32, #tpu.memory_space<smem>>, %arg3: memref<512x128xf32, #tpu.memory_space<any>>, %arg4: memref<1x8x128xf32, #tpu.memory_space<vmem>>, %arg5: memref<1x8x128xf32, #tpu.memory_space<vmem>>, %arg6: memref<8x128xf32, #tpu.memory_space<vmem>>, %arg7: memref<!tpu.dma_semaphore, #tpu.memory_space<semaphore_mem>>) attributes {dimension_semantics = [#tpu.dimension_semantics<parallel>, #tpu.dimension_semantics<parallel>], iteration_bounds = array<i64: 2, 1>, scalar_prefetch = 1 : i64, scratch_operands = 2 : i64, tpu.core_type = #tpu.core_type<tc>, window_params = [{}, {transform_indices = @transform_1, window_bounds = array<i64: 1, 8, 128>}, {transform_indices = @transform_2, window_bounds = array<i64: 1, 8, 128>}]} {
    %c8_i32 = arith.constant 8 : i32
    %0 = arith.muli %arg1, %c8_i32 : i32
    %c0_i32 = arith.constant 0 : i32
    %c8_i32_0 = arith.constant 8 : i32
    %1 = arith.addi %c0_i32, %c8_i32_0 : i32
    %c1_i32 = arith.constant 1 : i32
    scf.for %arg8 = %c0_i32 to %1 step %c1_i32  : i32 {
      %c1_i32_13 = arith.constant 1 : i32
      %8 = arith.muli %arg8, %c1_i32_13 : i32
      %c0_i32_14 = arith.constant 0 : i32
      %9 = arith.addi %c0_i32_14, %8 : i32
      %10 = arith.addi %0, %9 : i32
      %c7_i32 = arith.constant 7 : i32
      %11 = arith.minsi %10, %c7_i32 : i32
      %c8_i32_15 = arith.constant 8 : i32
      %12 = arith.muli %arg0, %c8_i32_15 : i32
      %13 = arith.addi %12, %11 : i32
      %14 = arith.index_cast %13 : i32 to index
      %15 = memref.load %arg2[%14] : memref<16xi32, #tpu.memory_space<smem>>
      %c0_i32_16 = arith.constant 0 : i32
      %16 = tpu.memref_slice %arg3[%15, %c0_i32_16] : memref<512x128xf32, #tpu.memory_space<any>> -> memref<1x128xf32, #tpu.memory_space<any>>
      %c0_i32_17 = arith.constant 0 : i32
      %17 = tpu.memref_slice %arg6[%9, %c0_i32_17] : memref<8x128xf32, #tpu.memory_space<vmem>> -> memref<1x128xf32, #tpu.memory_space<vmem>>
      tpu.enqueue_dma source(%16 : memref<1x128xf32, #tpu.memory_space<any>>) target(%17 : memref<1x128xf32, #tpu.memory_space<vmem>>) target_semaphore(%arg7 : memref<!tpu.dma_semaphore, #tpu.memory_space<semaphore_mem>>)
    }
    %c8_i32_1 = arith.constant 8 : i32
    %c0_i32_2 = arith.constant 0 : i32
    %c8_i32_3 = arith.constant 8 : i32
    %2 = arith.addi %c0_i32_2, %c8_i32_3 : i32
    %c1_i32_4 = arith.constant 1 : i32
    scf.for %arg8 = %c0_i32_2 to %2 step %c1_i32_4  : i32 {
      %c1_i32_13 = arith.constant 1 : i32
      %8 = arith.muli %arg8, %c1_i32_13 : i32
      %c0_i32_14 = arith.constant 0 : i32
      %9 = arith.addi %c0_i32_14, %8 : i32
      %c0_i32_15 = arith.constant 0 : i32
      %c0_i32_16 = arith.constant 0 : i32
      %10 = tpu.memref_slice %arg3[%c0_i32_15, %c0_i32_16] : memref<512x128xf32, #tpu.memory_space<any>> -> memref<1x128xf32, #tpu.memory_space<any>>
      %c0_i32_17 = arith.constant 0 : i32
      %11 = tpu.memref_slice %arg6[%9, %c0_i32_17] : memref<8x128xf32, #tpu.memory_space<vmem>> -> memref<1x128xf32, #tpu.memory_space<vmem>>
      tpu.wait_dma2 semaphore(%arg7 : memref<!tpu.dma_semaphore, #tpu.memory_space<semaphore_mem>>) src(%10 : memref<1x128xf32, #tpu.memory_space<any>>) dst(%11 : memref<1x128xf32, #tpu.memory_space<vmem>>)
    }
    %c8_i32_5 = arith.constant 8 : i32
    %c0 = arith.constant 0 : index
    %c0_6 = arith.constant 0 : index
    %3 = vector.load %arg6[%c0, %c0_6] : memref<8x128xf32, #tpu.memory_space<vmem>>, vector<8x128xf32>
    %c0_7 = arith.constant 0 : index
    %c0_8 = arith.constant 0 : index
    %c0_9 = arith.constant 0 : index
    %4 = vector.load %arg4[%c0_7, %c0_8, %c0_9] : memref<1x8x128xf32, #tpu.memory_space<vmem>>, vector<1x8x128xf32>
    %5 = vector.shape_cast %3 : vector<8x128xf32> to vector<1x8x128xf32>
    %6 = arith.addf %5, %4 : vector<1x8x128xf32>
    %c0_10 = arith.constant 0 : index
    %c0_11 = arith.constant 0 : index
    %c0_12 = arith.constant 0 : index
    %7 = vector.load %arg5[%c0_10, %c0_11, %c0_12] : memref<1x8x128xf32, #tpu.memory_space<vmem>>, vector<1x8x128xf32>
    tpu.vector_store %arg5[%c0_10, %c0_11, %c0_12], %6 {strides = array<i32>} : memref<1x8x128xf32, #tpu.memory_space<vmem>>, vector<1x8x128xf32>,
    return
  }
  func.func @transform_1(%arg0: i32, %arg1: i32, %arg2: memref<16xi32, #tpu.memory_space<smem>>) -> (i32, i32, i32) {
    %c0_i32 = arith.constant 0 : i32
    %c0_i32_0 = arith.constant 0 : i32
    %c0_i32_1 = arith.constant 0 : i32
    return %c0_i32, %arg1, %c0_i32_0 : i32, i32, i32
  }
  func.func @transform_2(%arg0: i32, %arg1: i32, %arg2: memref<16xi32, #tpu.memory_space<smem>>) -> (i32, i32, i32) {
    %c0_i32 = arith.constant 0 : i32
    %c0_i32_0 = arith.constant 0 : i32
    return %arg0, %arg1, %c0_i32 : i32, i32, i32
  }
}

</mosaic_0001>

<llo_original>
// kernel: bert_embedding.1
$region0: #{bert_embedding.1}
  #allocation0 [shape = 'u32[]', space=smem, size = 0x4, offset = 0x4, fixed_abs, tag = 'smem constant byte address 0x4 - core index']
  #allocation1 [shape = 'u32[144,128]{1,0:T(1,128)}', space=vmem, size = 0x12000, scoped, tag = 'internal scratch']
  #allocation2 [shape = 'f32[8,128]{1,0:T(8,128)}', space=vmem, size = 0x1000, scoped, tag = 'scratch operand']
  #allocation3 [shape = 's32[1]{0}', space=sflag, size = 0x4, scoped, tag = 'scratch operand']
  #allocation4 [shape = 's32[1]{0}', space=sflag, size = 0x4, scoped, tag = 'scoped memory for bert_embedding.1']
  #allocation5 [shape = 'u8[512]{0}', space=smem, size = 0x200, scoped, tag = 'prefetched SMEM operand 0']
  #allocation8 [shape = 's32[]', space=sflag, size = 0x4, offset = 0, fixed_abs, tag = 'sflag constant byte address 0x0 - dummy sync flag']
  #allocation9 [shape = 's32[]', space=sflag, size = 0x4, offset = 0, fixed_abs, tag = 'sflag constant byte address 0x0 - dummy sync flag']
  #allocation10 [shape = 'u32[]', space=smem, size = 0x4, offset = 0x44, fixed_abs, tag = 'smem constant byte address 0x44 - assertion arg 0']
  #allocation11 [shape = 'u32[]', space=smem, size = 0x4, offset = 0x48, fixed_abs, tag = 'smem constant byte address 0x48 - assertion arg 1']
  %s0 = inlined_call_operand.vmem [shape: s32[16], index: 0, kind: input, shape index: {}]
  %s1 = inlined_call_operand.hbm [shape: f32[512,128], index: 1, kind: input, shape index: {}]
  %s2 = inlined_call_operand.vmem [shape: f32[1,8,128], index: 2, kind: input, shape index: {}]
  %s3 = inlined_call_operand.hbm [shape: f32[2,8,128], index: 3, kind: output, shape index: {}]
  %s4 = sld [smem:[#allocation0]]
  $region55: #{bert_embedding.1} parent=0
    _
  %s6 = ssub.s32 1, %s4
  %s7 = scalar_select 0, %s6, %s4
  %s8 = sshll.u32 %s0, 4
  %s9 = int_to_ptr.vmem [resolvable:$true] %s8
  %11 = dma.vmem_to_smem %s9, 16, [#allocation5], [#allocation4]
  %12 = dma.done [#allocation4], 16
  %13 = sfence
  $region1: #{bert_embedding.1} parent=0
    #allocation6 [shape = 'u8[8192]{0}', space=vmem, size = 0x2000, scoped, tag = 'output window, operand 0']
    #allocation7 [shape = 's32[2]{0}', space=sflag, size = 0x8, scoped, tag = 'scoped memory for bert_embedding.1']
    %14 = vsyncpa [#allocation7], 0
    %s15 = scalar_lea.sflag [#allocation7], 1
    %16 = vsyncpa %s15, 0
    loop: start=0, step=1, limit=4
    $region2: #{bert_embedding.1} parent=1 // loop_pre_header
      _
    $region3: #{bert_embedding.1} parent=1 // loop_header
      %s18 = sphi 0, %s22
      %p19 = scmp.ge.s32.totalorder %s18, 4
      %s25 = sphi 0, %s37
      %s26 = sphi 0, %s33
      %s27 = sphi 0, %s25
      %s28 = sphi 0, %s26
      %s29 = sphi 0, %s27
      %s30 = sphi 0, %s28
      %s40 = sphi 0, %s42
      %s43 = sphi 0, %s40
      %s44 = sphi 0, %s43
      %s60 = sphi 0, %s44
      %s68 = sphi 0, %s70
      %s71 = sphi 0, %s68
      %s72 = sphi 0, %s71
      %s88 = sphi 0, %s72
    $region4: #{bert_embedding.1} parent=1 // loop_header_branch
      %21 = sbr.rel (%p19) target = $region8
    $region5: #{bert_embedding.1} parent=1 // loop_body
      %s23 = ssub.s32 %s18, 1
      %s24 = ssub.s32 %s18, 2
      %s31 = sadd.s32 1, %s26
      %p32 = scmp.ge.s32.totalorder %s31, 1
      %s33 = scalar_select %p32, 0, %s31
      %s34 = sadd.s32 1, %s25
      %s35 = scalar_select %p32, %s34, %s25
      %p36 = scmp.ge.s32.totalorder %s35, 2
      %s37 = scalar_select %p36, 0, %s35
      %s38 = ssub.s32 %s26, %s33
      %p39 = scmp.eq.s32.totalorder %s38, 0
      %s41 = sadd.s32 %s40, 1
      %s42 = scalar_select %p39, %s40, %s41
      %p45 = pneg %p39
      %p46 = scmp.eq.s32.totalorder %s18, 1
      %p47 = por %p45, %p46
      %p48 = scmp.ne.s32.totalorder %s40, %s43
      %p49 = scmp.eq.s32.totalorder %s18, 0
      %p50 = por %p48, %p49
      %p51 = scmp.ne.s32.totalorder %s40, %s43
      %p52 = scmp.eq.s32.totalorder %s23, 1
      %p53 = por %p51, %p52
      %p54 = scmp.ne.s32.totalorder %s43, %s44
      %p55 = scmp.eq.s32.totalorder %s23, 0
      %p56 = por %p54, %p55
      %p57 = scmp.ne.s32.totalorder %s43, %s44
      %p58 = scmp.eq.s32.totalorder %s24, 1
      %p59 = por %p57, %p58
      %p61 = scmp.ne.s32.totalorder %s44, %s60
      %p62 = scmp.eq.s32.totalorder %s24, 0
      %p63 = por %p61, %p62
      %s64 = ssub.s32 %s25, %s37
      %s65 = ssub.s32 %s26, %s33
      %s66 = sor.u32 %s64, %s65
      %p67 = scmp.eq.s32.totalorder %s66, 0
      %s69 = sadd.s32 %s68, 1
      %s70 = scalar_select %p67, %s68, %s69
      %p73 = pneg %p67
      %p74 = scmp.eq.s32.totalorder %s18, 1
      %p75 = por %p73, %p74
      %p76 = scmp.ne.s32.totalorder %s68, %s71
      %p77 = scmp.eq.s32.totalorder %s18, 0
      %p78 = por %p76, %p77
      %p79 = scmp.ne.s32.totalorder %s68, %s71
      %p80 = scmp.eq.s32.totalorder %s23, 1
      %p81 = por %p79, %p80
      %p82 = scmp.ne.s32.totalorder %s71, %s72
      %p83 = scmp.eq.s32.totalorder %s23, 0
      %p84 = por %p82, %p83
      %p85 = scmp.ne.s32.totalorder %s71, %s72
      %p86 = scmp.eq.s32.totalorder %s24, 1
      %p87 = por %p85, %p86
      %p89 = scmp.ne.s32.totalorder %s72, %s88
      %p90 = scmp.eq.s32.totalorder %s24, 0
      %p91 = por %p89, %p90
      %p92 = scmp.le.s32.totalorder 1, %s18
      %p93 = scmp.lt.s32.totalorder %s18, 3
      %p94 = pnand %p92, %p93
      %p95 = pneg %p94
      // Predicated region
      $region9: #{bert_embedding.1} parent=5 // pred_check
        _
      $region10: #{bert_embedding.1} parent=5 // pred_check_branch
        %97 = sbr.rel (%p94) target = $region12
      $region11: #{bert_embedding.1} parent=5 // pred_region
        %s98 = ssub.s32 %s18, 1
        // Predicated region
        $region13: #{bert_embedding.1} parent=11 // pred_check
          %p99 = pneg %p56
        $region14: #{bert_embedding.1} parent=11 // pred_check_branch
          %101 = sbr.rel (%p99) target = $region16
        $region15: #{bert_embedding.1} parent=11 // pred_region
          %p102 = scmp.lt.s32.totalorder %s28, 0
          %s103 = scalar_select %p102, %s28, 0
          %s104 = smul.addr %s103, 8
          %s105 = scalar_lea.vmem %s2, %s104
        $region16: #{bert_embedding.1} parent=11 // pred_fallthru
          _
      $region12: #{bert_embedding.1} parent=5 // pred_fallthru
        _
      %p106 = scmp.lt.s32.totalorder %s18, 2
      // Predicated region
      $region17: #{bert_embedding.1} parent=5 // pred_check
        %p107 = pneg %p106
      $region18: #{bert_embedding.1} parent=5 // pred_check_branch
        %109 = sbr.rel (%p107) target = $region20
      $region19: #{bert_embedding.1} parent=5 // pred_region
        _
      $region20: #{bert_embedding.1} parent=5 // pred_fallthru
        _
      %p110 = scmp.le.s32.totalorder 1, %s18
      %p111 = scmp.lt.s32.totalorder %s18, 3
      %p112 = pnand %p110, %p111
      %p113 = pneg %p112
      // Predicated region
      $region21: #{bert_embedding.1} parent=5 // pred_check
        _
      $region22: #{bert_embedding.1} parent=5 // pred_check_branch
        %115 = sbr.rel (%p112) target = $region24
      $region23: #{bert_embedding.1} parent=5 // pred_region
        %s116 = ssub.s32 %s18, 1
        %p117 = scmp.lt.s32.totalorder %s28, 0
        %s118 = scalar_select %p117, %s28, 0
        %s119 = smul.addr %s118, 8
        %s120 = scalar_lea.vmem %s2, %s119
        %p121 = pneg %p56
        %p122 = pneg %p53
        %p123 = pneg %p84
        %p124 = pneg %p81
        %s125 = sand.u32 %s71, 1
        %s126 = scalar_lea.sflag [#allocation7], %s125
        %s127 = sand.u32 %s71, 1
        %s128 = smul.addr %s127, 8
        %s129 = scalar_lea.vmem [#allocation6], %s128
        %p130 = scmp.lt.s32.totalorder %s28, 0
        %s131 = scalar_select %p130, %s28, 0
        %s132 = smul.addr %s131, 8
        %s133 = scalar_lea.vmem %s2, %s132
        %s134 = smul.u32 %s28, 8
        loop: start=0, step=1, limit=8
        $region25: #{bert_embedding.1} parent=23 // loop_pre_header
          _
        $region26: #{bert_embedding.1} parent=23 // loop_header
          %s136 = sphi 0, %s140
          %p137 = scmp.ge.s32.totalorder %s136, 8
        $region27: #{bert_embedding.1} parent=23 // loop_header_branch
          %139 = sbr.rel (%p137) target = $region31
        $region28: #{bert_embedding.1} parent=23 // loop_body
          %s141 = sadd.s32 %s134, %s136
          %p142 = scmp.lt.s32.totalorder %s141, 7
          %s143 = scalar_select %p142, %s141, 7
          %s144 = smul.u32 %s27, 8
          %s145 = sadd.s32 %s144, %s143
          %s146 = sld [smem:[#allocation5 + %s145]]
          %s147 = smul.addr %s146, 16
          %s148 = scalar_lea.hbm %s1, %s147
          %s149 = scalar_lea.vmem [#allocation2], %s136
          // Predicated region
          $region32: #{bert_embedding.1} parent=28 // pred_check
            _
          $region33: #{bert_embedding.1} parent=28 // pred_check_branch
            %151 = sbr.rel target = $region35
          $region34: #{bert_embedding.1} parent=28 // pred_region
            %152 = sst [smem:[#allocation10]] [#allocation9]
            %153 = sst [smem:[#allocation11]] [#allocation8]
          $region35: #{bert_embedding.1} parent=28 // pred_fallthru
            _
          %155 = shalt.err (0)
          %s157 = sshll.u32 %s149, 4
          %s158 = int_to_ptr.vmem [resolvable:$true] %s157
          %160 = dma.hbm_to_vmem [thread:$0]  %s148, 16, %s158, [#allocation3]
        $region29: #{bert_embedding.1} parent=23 // loop_footer
          %s140 = sadd.s32 1, %s136
        $region30: #{bert_embedding.1} parent=23 // loop_footer_branch
          %135 = sbr.rel target = $region26
        $region31: #{bert_embedding.1} parent=23 // loop_exit
          _
        loop: start=0, step=1, limit=8
        $region36: #{bert_embedding.1} parent=23 // loop_pre_header
          _
        $region37: #{bert_embedding.1} parent=23 // loop_header
          %s162 = sphi 0, %s166
          %p163 = scmp.ge.s32.totalorder %s162, 8
        $region38: #{bert_embedding.1} parent=23 // loop_header_branch
          %165 = sbr.rel (%p163) target = $region42
        $region39: #{bert_embedding.1} parent=23 // loop_body
          %s167 = smul.u32 1, 1
          %s168 = sshll.u32 %s167, 4
          %169 = dma.done [#allocation3], %s168
        $region40: #{bert_embedding.1} parent=23 // loop_footer
          %s166 = sadd.s32 1, %s162
        $region41: #{bert_embedding.1} parent=23 // loop_footer_branch
          %161 = sbr.rel target = $region37
        $region42: #{bert_embedding.1} parent=23 // loop_exit
          _
        %v170 = vld [vmem:[#allocation2] sm:$0xff]
        %v171 = vld [vmem:[%s133] sm:$0xff]
        %v172 = vadd.f32 %v170, %v171
        %173 = vst [vmem:[%s129] sm:$0xff] %v172
        %s174 = sand.u32 %s71, 1
        %s175 = scalar_lea.sflag [#allocation7], %s174
        %s176 = sand.u32 %s71, 1
        %s177 = smul.addr %s176, 8
        %s178 = scalar_lea.vmem [#allocation6], %s177
        // Predicated region
        $region43: #{bert_embedding.1} parent=23 // pred_check
          %p179 = pneg %p81
        $region44: #{bert_embedding.1} parent=23 // pred_check_branch
          %181 = sbr.rel (%p179) target = $region46
        $region45: #{bert_embedding.1} parent=23 // pred_region
          %s183 = ssub.s32 128, 128
          %184 = vsyncadd %s175, %s183
          %s185 = sadd.s32 %s28, %s27
          %s186 = smul.addr %s185, 128
          %s187 = scalar_lea.hbm %s3, %s186
          %s189 = sshll.u32 %s178, 4
          %s190 = int_to_ptr.vmem [resolvable:$true] %s189
          %192 = dma.vmem_to_hbm [thread:$0]  %s190, 128, %s187, %s175
        $region46: #{bert_embedding.1} parent=23 // pred_fallthru
          _
      $region24: #{bert_embedding.1} parent=5 // pred_fallthru
        _
      %p193 = scmp.le.s32.totalorder 2, %s18
      // Predicated region
      $region47: #{bert_embedding.1} parent=5 // pred_check
        %p194 = pneg %p193
      $region48: #{bert_embedding.1} parent=5 // pred_check_branch
        %196 = sbr.rel (%p194) target = $region50
      $region49: #{bert_embedding.1} parent=5 // pred_region
        %s197 = ssub.s32 %s18, 2
        // Predicated region
        $region51: #{bert_embedding.1} parent=49 // pred_check
          %p198 = pneg %p87
        $region52: #{bert_embedding.1} parent=49 // pred_check_branch
          %200 = sbr.rel (%p198) target = $region54
        $region53: #{bert_embedding.1} parent=49 // pred_region
          %s201 = sand.u32 %s72, 1
          %s202 = scalar_lea.sflag [#allocation7], %s201
          %s203 = sand.u32 %s72, 1
          %s204 = smul.addr %s203, 8
          %s205 = scalar_lea.vmem [#allocation6], %s204
          %206 = dma.done %s202, 128
        $region54: #{bert_embedding.1} parent=49 // pred_fallthru
          _
      $region50: #{bert_embedding.1} parent=5 // pred_fallthru
        _
    $region6: #{bert_embedding.1} parent=1 // loop_footer
      %s22 = sadd.s32 1, %s18
    $region7: #{bert_embedding.1} parent=1 // loop_footer_branch
      %17 = sbr.rel target = $region3
    $region8: #{bert_embedding.1} parent=1 // loop_exit
      _
    %207 = vsyncpa [#allocation7], 1
    %s208 = scalar_lea.sflag [#allocation7], 1
    %209 = vsyncpa %s208, 1
  %210 = vsyncmov [#allocation3]
  %s211 = vpop.sfrf %210
  %p212 = scmp.eq.s32.totalorder %s211, 0
  %p213 = pneg %p212
  %215 = shalt.err (%p213)

</llo_original>
